<compile_context>
chip_gen: v6e
topology: v6e:2x2x1
jax: 0.10.0
libtpu: 0.0.40
codegen_flags: <defaults>
</compile_context>

<pallas_src>
import functools

import jax
import jax.numpy as jnp
from jax.experimental import pallas as pl
from jax.experimental.pallas import tpu as pltpu

_LANE = 128
_MAX_TILE_LANES = 32768          # lane tile cap; ~11.5 MiB double-buffered
_VMEM_LIMIT = 32 * 1024 * 1024   # clears v5e's 16 MiB scoped default, fits v7x


def _num_tensorcores() -> int:
    """2 on v7x (dual TensorCore per chip), else 1.  Best-effort heuristic."""
    try:
        kind = getattr(jax.devices()[0], "device_kind", "") or ""
        if "v7" in kind.lower():
            return 2
    except Exception:
        pass
    return 1


def _pick_tile(batch: int) -> int:
    """Lane-axis (batch) tile: as big as possible; split only for v7x's 2 TCs."""
    n_tc = _num_tensorcores()
    target = batch
    if n_tc > 1 and batch >= n_tc * _LANE:
        target = -(-batch // n_tc)                 # ~B/2 per core on v7x
        target = -(-target // _LANE) * _LANE       # round up to lane multiple
    target = min(target, _MAX_TILE_LANES)
    if target >= batch:
        return batch                               # single full-extent tile
    return max(_LANE, (target // _LANE) * _LANE)   # sub-array tiles: 128 multiple


def _timewarp_step_kernel(x_ref, last_ref, w_ref, b_ref, o_ref, xclean_ref):
    # x_ref/last_ref: [4, TB]; w_ref: [H, 4]; b_ref: [H, 1]
    # o_ref: [H, TB]; xclean_ref: [4, TB] (f32 recurrent state)
    x = x_ref[...].astype(jnp.float32)
    x = jnp.where(jnp.isnan(x), 0.0, x)            # torch.where(isnan(x), 0, x)
    xclean_ref[...] = x                            # module state: last_x <- cleaned x

    warped = (last_ref[...].astype(jnp.float32) + x) * 0.5
    # Second NaN guard kept for exact module parity (reachable for +/-inf input).
    warped = jnp.where(jnp.isnan(warped), 0.0, warped)

    # Linear(4, H) as 4 VPU broadcast-FMAs on [H, TB] tiles; warped[k:k+1, :] is
    # a stride-0 sublane broadcast, the [H, 1] weight column a one-off per-tile
    # lane broadcast.  K=4 is far too small to pay for an MXU pass.
    w = w_ref[...]
    acc = b_ref[...] + w[:, 0:1] * warped[0:1, :]
    acc = acc + w[:, 1:2] * warped[1:2, :]
    acc = acc + w[:, 2:3] * warped[2:3, :]
    acc = acc + w[:, 3:4] * warped[3:4, :]
    o_ref[...] = acc.astype(o_ref.dtype)


def _timewarp_first_kernel(x_ref, w_ref, b_ref, o_ref, xclean_ref):
    # First call of the stateful module: last_x := cleaned x, so warped == cleaned x.
    # One-input variant avoids DMA-ing the same HBM buffer twice.
    x = x_ref[...].astype(jnp.float32)
    x = jnp.where(jnp.isnan(x), 0.0, x)
    xclean_ref[...] = x
    w = w_ref[...]
    acc = b_ref[...] + w[:, 0:1] * x[0:1, :]
    acc = acc + w[:, 1:2] * x[1:2, :]
    acc = acc + w[:, 2:3] * x[2:3, :]
    acc = acc + w[:, 3:4] * x[3:4, :]
    o_ref[...] = acc.astype(o_ref.dtype)


def _specs(tb: int, H: int, has_last: bool):
    vmem = pltpu.MemorySpace.VMEM
    in_specs = [pl.BlockSpec((4, tb), lambda i: (0, i), memory_space=vmem)]   # x
    if has_last:
        in_specs.append(pl.BlockSpec((4, tb), lambda i: (0, i), memory_space=vmem))
    in_specs += [
        pl.BlockSpec((H, 4), lambda i: (0, 0), memory_space=vmem),            # W (torch layout)
        pl.BlockSpec((H, 1), lambda i: (0, 0), memory_space=vmem),            # bias column
    ]
    out_specs = (
        pl.BlockSpec((H, tb), lambda i: (0, i), memory_space=vmem),           # out
        pl.BlockSpec((4, tb), lambda i: (0, i), memory_space=vmem),           # cleaned x (f32)
    )
    return in_specs, out_specs


@functools.partial(jax.jit, static_argnames=("tb",))
def _time_warp_first_t(x_t, w, b_col, tb=None):
    F, B = x_t.shape
    assert F == 4, "Input tensor must have 4 features: open, high, low, close"
    H = w.shape[0]
    if tb is None:
        tb = _pick_tile(B)
    in_specs, out_specs = _specs(tb, H, has_last=False)
    return pl.pallas_call(
        _timewarp_first_kernel,
        out_shape=(jax.ShapeDtypeStruct((H, B), x_t.dtype),
                   jax.ShapeDtypeStruct((4, B), jnp.float32)),
        grid=(pl.cdiv(B, tb),),
        in_specs=in_specs,
        out_specs=out_specs,
        compiler_params=pltpu.CompilerParams(
            dimension_semantics=("parallel",),
            vmem_limit_bytes=_VMEM_LIMIT),
    )(x_t, w, b_col)


@functools.partial(jax.jit, static_argnames=("tb",))
def _time_warp_step_t(x_t, last_t, w, b_col, tb=None):
    F, B = x_t.shape
    assert F == 4, "Input tensor must have 4 features: open, high, low, close"
    H = w.shape[0]
    if tb is None:
        tb = _pick_tile(B)
    in_specs, out_specs = _specs(tb, H, has_last=True)
    return pl.pallas_call(
        _timewarp_step_kernel,
        out_shape=(jax.ShapeDtypeStruct((H, B), x_t.dtype),
                   jax.ShapeDtypeStruct((4, B), jnp.float32)),
        grid=(pl.cdiv(B, tb),),
        in_specs=in_specs,
        out_specs=out_specs,
        compiler_params=pltpu.CompilerParams(
            dimension_semantics=("parallel",),
            vmem_limit_bytes=_VMEM_LIMIT),
    )(x_t, last_t, w, b_col)


def init_timewarp_params(w, b):
    """One-time parameter prep (hoisted out of the per-step call).

    w: [hidden_dim, 4] (torch nn.Linear layout, used as-is); b: [hidden_dim].
    Returns (w [H, 4] f32, b_col [H, 1] f32) ready for the kernel.
    """
    return jnp.asarray(w, jnp.float32), jnp.asarray(b, jnp.float32).reshape(-1, 1)


def time_warp_layer_t(x_t, w, b_col, last_t=None, *, tb=None):
    """Batch-on-lanes layout (preferred).

    x_t: [4, B]; last_t: previous *cleaned* x [4, B] f32 or None (first call).
    Returns (out [H, B], x_clean [4, B] f32).  Feed x_clean back as next last_t.
    """
    if last_t is None:
        return _time_warp_first_t(x_t, w, b_col, tb=tb)
    return _time_warp_step_t(x_t, last_t, w, b_col, tb=tb)


def time_warp_layer(x, w, b_col, last_x=None, *, tb=None):
    """Torch-layout convenience wrapper (x: [B, 4] -> out: [B, H]).

    Prefer time_warp_layer_t and keep the surrounding model in the
    batch-on-lanes layout so the boundary transposes disappear entirely.
    """
    last_t = None if last_x is None else jnp.transpose(last_x)
    out_t, clean_t = time_warp_layer_t(jnp.transpose(x), w, b_col, last_t, tb=tb)
    return jnp.transpose(out_t), jnp.transpose(clean_t)


if __name__ == "__main__":
    hidden_dim = 32
    batch = 8

    key = jax.random.PRNGKey(0)
    kx0, kx1, kw, kb, kbig, klast = jax.random.split(key, 6)

    # nn.Linear(4, hidden_dim) parameters in torch layout: w [H, 4], b [H]
    bound = 1.0 / (4.0 ** 0.5)
    w_torch = jax.random.uniform(kw, (hidden_dim, 4), jnp.float32, -bound, bound)
    b_torch = jax.random.uniform(kb, (hidden_dim,), jnp.float32, -bound, bound)
    w, b_col = init_timewarp_params(w_torch, b_torch)     # one-time prep

    # two consecutive "market ticks", with NaNs to exercise the guards
    x0 = jax.random.normal(kx0, (batch, 4), jnp.float32)
    x0 = x0.at[0, 1].set(jnp.nan).at[3, 2].set(jnp.nan)
    x1 = jax.random.normal(kx1, (batch, 4), jnp.float32)
    x1 = x1.at[5, 0].set(jnp.nan)

    def _clean(a):
        return jnp.where(jnp.isnan(a), 0.0, a)

    # step 1 (module state last_x is None) and step 2, torch-layout wrapper
    out0, state0 = time_warp_layer(x0, w, b_col)
    out1, state1 = time_warp_layer(x1, w, b_col, last_x=state0)
    jax.block_until_ready((out0, out1, state1))

    ref0 = _clean(x0) @ w_torch.T + b_torch                        # first call
    ref1 = ((_clean(x0) + _clean(x1)) * 0.5) @ w_torch.T + b_torch # second call
    assert out0.shape == (batch, hidden_dim)
    assert jnp.allclose(out0, ref0, atol=1e-5, rtol=1e-5)
    assert jnp.allclose(out1, ref1, atol=1e-5, rtol=1e-5)
    assert jnp.allclose(state0, _clean(x0)) and jnp.allclose(state1, _clean(x1))
    assert state1.dtype == jnp.float32

    # batch-on-lanes native API, larger batch, single full-extent lane tile
    B_big = 1000
    xb = jax.random.normal(kbig, (4, B_big), jnp.float32)
    lastb = _clean(jax.random.normal(klast, (4, B_big), jnp.float32))
    outb, cleanb = time_warp_layer_t(xb, w, b_col, last_t=lastb)
    jax.block_until_ready(outb)
    refb = w_torch @ ((lastb + _clean(xb)) * 0.5) + b_col
    assert jnp.allclose(outb, refb, atol=1e-5, rtol=1e-5)
    assert jnp.allclose(cleanb, _clean(xb))

    # multi-tile grid path (forced 128-lane tile -> grid=(8,)) for coverage
    B_tiled = 1024
    xt = jax.random.normal(kx0, (4, B_tiled), jnp.float32)
    lt = _clean(jax.random.normal(kx1, (4, B_tiled), jnp.float32))
    outt, _ = time_warp_layer_t(xt, w, b_col, last_t=lt, tb=128)
    jax.block_until_ready(outt)
    reft = w_torch @ ((lt + _clean(xt)) * 0.5) + b_col
    assert jnp.allclose(outt, reft, atol=1e-5, rtol=1e-5)

    print("KERNEL_OK")
</pallas_src>

<mosaic_0001>
module attributes {stable_mosaic.version = 11 : i64} {
  func.func @_timewarp_first_kernel(%arg0: i32, %arg1: memref<4x8xf32, #tpu.memory_space<vmem>>, %arg2: memref<32x4xf32, #tpu.memory_space<vmem>>, %arg3: memref<32x1xf32, #tpu.memory_space<vmem>>, %arg4: memref<32x8xf32, #tpu.memory_space<vmem>>, %arg5: memref<4x8xf32, #tpu.memory_space<vmem>>) attributes {dimension_semantics = [#tpu.dimension_semantics<parallel>], iteration_bounds = array<i64: 1>, scalar_prefetch = 0 : i64, scratch_operands = 0 : i64, tpu.core_type = #tpu.core_type<tc>, window_params = [{transform_indices = @transform_0, window_bounds = array<i64: 4, 8>}, {pipeline_mode = #tpu.pipeline_mode<synchronous>, transform_indices = @transform_1, window_bounds = array<i64: 32, 4>}, {pipeline_mode = #tpu.pipeline_mode<synchronous>, transform_indices = @transform_2, window_bounds = array<i64: 32, 1>}, {transform_indices = @transform_3, window_bounds = array<i64: 32, 8>}, {transform_indices = @transform_4, window_bounds = array<i64: 4, 8>}]} {
    %c0 = arith.constant 0 : index
    %c0_0 = arith.constant 0 : index
    %0 = vector.load %arg1[%c0, %c0_0] : memref<4x8xf32, #tpu.memory_space<vmem>>, vector<4x8xf32>
    %1 = arith.cmpf one, %0, %0 : vector<4x8xf32>
    %cst = arith.constant 0.000000e+00 : f32
    %2 = vector.broadcast %cst : f32 to vector<4x8xf32>
    %3 = arith.select %1, %2, %0 : vector<4x8xi1>, vector<4x8xf32>
    %c0_1 = arith.constant 0 : index
    %c0_2 = arith.constant 0 : index
    %4 = vector.load %arg5[%c0_1, %c0_2] : memref<4x8xf32, #tpu.memory_space<vmem>>, vector<4x8xf32>
    tpu.vector_store %arg5[%c0_1, %c0_2], %3 {strides = array<i32>} : memref<4x8xf32, #tpu.memory_space<vmem>>, vector<4x8xf32>,
    %c0_3 = arith.constant 0 : index
    %c0_4 = arith.constant 0 : index
    %5 = vector.load %arg2[%c0_3, %c0_4] : memref<32x4xf32, #tpu.memory_space<vmem>>, vector<32x4xf32>
    %c0_5 = arith.constant 0 : index
    %c0_6 = arith.constant 0 : index
    %6 = vector.load %arg3[%c0_5, %c0_6] : memref<32x1xf32, #tpu.memory_space<vmem>>, vector<32x1xf32>
    %7 = vector.extract_strided_slice %5 {offsets = [0, 0], sizes = [32, 1], strides = [1, 1]} : vector<32x4xf32> to vector<32x1xf32>
    %8 = vector.extract_strided_slice %3 {offsets = [0, 0], sizes = [1, 8], strides = [1, 1]} : vector<4x8xf32> to vector<1x8xf32>
    %9 = vector.broadcast %7 : vector<32x1xf32> to vector<32x8xf32>
    %10 = vector.broadcast %8 : vector<1x8xf32> to vector<32x8xf32>
    %11 = arith.mulf %9, %10 : vector<32x8xf32>
    %12 = vector.broadcast %6 : vector<32x1xf32> to vector<32x8xf32>
    %13 = arith.addf %12, %11 : vector<32x8xf32>
    %14 = vector.extract_strided_slice %5 {offsets = [0, 1], sizes = [32, 1], strides = [1, 1]} : vector<32x4xf32> to vector<32x1xf32>
    %15 = vector.extract_strided_slice %3 {offsets = [1, 0], sizes = [1, 8], strides = [1, 1]} : vector<4x8xf32> to vector<1x8xf32>
    %16 = vector.broadcast %14 : vector<32x1xf32> to vector<32x8xf32>
    %17 = vector.broadcast %15 : vector<1x8xf32> to vector<32x8xf32>
    %18 = arith.mulf %16, %17 : vector<32x8xf32>
    %19 = arith.addf %13, %18 : vector<32x8xf32>
    %20 = vector.extract_strided_slice %5 {offsets = [0, 2], sizes = [32, 1], strides = [1, 1]} : vector<32x4xf32> to vector<32x1xf32>
    %21 = vector.extract_strided_slice %3 {offsets = [2, 0], sizes = [1, 8], strides = [1, 1]} : vector<4x8xf32> to vector<1x8xf32>
    %22 = vector.broadcast %20 : vector<32x1xf32> to vector<32x8xf32>
    %23 = vector.broadcast %21 : vector<1x8xf32> to vector<32x8xf32>
    %24 = arith.mulf %22, %23 : vector<32x8xf32>
    %25 = arith.addf %19, %24 : vector<32x8xf32>
    %26 = vector.extract_strided_slice %5 {offsets = [0, 3], sizes = [32, 1], strides = [1, 1]} : vector<32x4xf32> to vector<32x1xf32>
    %27 = vector.extract_strided_slice %3 {offsets = [3, 0], sizes = [1, 8], strides = [1, 1]} : vector<4x8xf32> to vector<1x8xf32>
    %28 = vector.broadcast %26 : vector<32x1xf32> to vector<32x8xf32>
    %29 = vector.broadcast %27 : vector<1x8xf32> to vector<32x8xf32>
    %30 = arith.mulf %28, %29 : vector<32x8xf32>
    %31 = arith.addf %25, %30 : vector<32x8xf32>
    %c0_7 = arith.constant 0 : index
    %c0_8 = arith.constant 0 : index
    %32 = vector.load %arg4[%c0_7, %c0_8] : memref<32x8xf32, #tpu.memory_space<vmem>>, vector<32x8xf32>
    tpu.vector_store %arg4[%c0_7, %c0_8], %31 {strides = array<i32>} : memref<32x8xf32, #tpu.memory_space<vmem>>, vector<32x8xf32>,
    return
  }
  func.func @transform_0(%arg0: i32) -> (i32, i32) {
    %c0_i32 = arith.constant 0 : i32
    %c0_i32_0 = arith.constant 0 : i32
    return %c0_i32, %arg0 : i32, i32
  }
  func.func @transform_1(%arg0: i32) -> (i32, i32) {
    %c0_i32 = arith.constant 0 : i32
    %c0_i32_0 = arith.constant 0 : i32
    %c0_i32_1 = arith.constant 0 : i32
    return %c0_i32, %c0_i32_0 : i32, i32
  }
  func.func @transform_2(%arg0: i32) -> (i32, i32) {
    %c0_i32 = arith.constant 0 : i32
    %c0_i32_0 = arith.constant 0 : i32
    %c0_i32_1 = arith.constant 0 : i32
    return %c0_i32, %c0_i32_0 : i32, i32
  }
  func.func @transform_3(%arg0: i32) -> (i32, i32) {
    %c0_i32 = arith.constant 0 : i32
    %c0_i32_0 = arith.constant 0 : i32
    return %c0_i32, %arg0 : i32, i32
  }
  func.func @transform_4(%arg0: i32) -> (i32, i32) {
    %c0_i32 = arith.constant 0 : i32
    %c0_i32_0 = arith.constant 0 : i32
    return %c0_i32, %arg0 : i32, i32
  }
}

</mosaic_0001>

<llo_original>
// kernel: _time_warp_first_t.1
$region0: #{_time_warp_first_t.1}
  #allocation0 [shape = 'u32[]', space=smem, size = 0x4, offset = 0x4, fixed_abs, tag = 'smem constant byte address 0x4 - core index']
  #allocation1 [shape = 'u32[144,128]{1,0:T(1,128)}', space=vmem, size = 0x12000, scoped, tag = 'internal scratch']
  %s0 = inlined_call_operand.vmem [shape: f32[4,8], index: 0, kind: input, shape index: {}]
  %s1 = inlined_call_operand.vmem [shape: f32[32,4], index: 1, kind: input, shape index: {}]
  %s2 = inlined_call_operand.vmem [shape: f32[32,1], index: 2, kind: input, shape index: {}]
  %s3 = inlined_call_operand.vmem [shape: f32[32,8], index: 3, kind: output, shape index: {0}]
  %s4 = inlined_call_operand.hbm [shape: f32[4,8], index: 4, kind: output, shape index: {1}]
  %5 = xla_tuple %s3, %s4
  %s6 = sld [smem:[#allocation0]]
  $region30: #{_time_warp_first_t.1} parent=0
    _
  %s8 = ssub.s32 1, %s6
  %s9 = scalar_select 0, %s8, %s6
  $region1: #{_time_warp_first_t.1} parent=0
    #allocation2 [shape = 'u8[2048]{0}', space=vmem, size = 0x800, scoped, tag = 'output window, operand 1, single buffered']
    #allocation3 [shape = 's32[1]{0}', space=sflag, size = 0x4, scoped, tag = 'scoped memory for _time_warp_first_t.1']
    %10 = vsyncpa [#allocation3], 0
    // Predicated region
    $region2: #{_time_warp_first_t.1} parent=1 // pred_check
      _
    $region3: #{_time_warp_first_t.1} parent=1 // pred_check_branch
      %12 = sbr.rel (0) target = $region5
    $region4: #{_time_warp_first_t.1} parent=1 // pred_region
      _
    $region5: #{_time_warp_first_t.1} parent=1 // pred_fallthru
      _
    // Predicated region
    $region6: #{_time_warp_first_t.1} parent=1 // pred_check
      _
    $region7: #{_time_warp_first_t.1} parent=1 // pred_check_branch
      %14 = sbr.rel (0) target = $region9
    $region8: #{_time_warp_first_t.1} parent=1 // pred_region
      _
    $region9: #{_time_warp_first_t.1} parent=1 // pred_fallthru
      _
    // Predicated region
    $region10: #{_time_warp_first_t.1} parent=1 // pred_check
      _
    $region11: #{_time_warp_first_t.1} parent=1 // pred_check_branch
      %16 = sbr.rel (0) target = $region13
    $region12: #{_time_warp_first_t.1} parent=1 // pred_region
      _
    $region13: #{_time_warp_first_t.1} parent=1 // pred_fallthru
      _
    %v17 = vld [vmem:[%s0] sm:$0xf]
    %vm18 = vcmp.ne.f32.partialorder %v17, %v17
    %v19 = vsel %vm18, 0.0, %v17
    %vm20 = vcmask 60416
    %21 = vst.msk [vmem:[#allocation2] sm:$0xf] %vm20, %v19
    %v22 = vld [vmem:[%s1] sm:$0xff]
    %v23 = vld [vmem:[%s1 + $0x8] sm:$0xff]
    %v24 = vld [vmem:[%s1 + $0x10] sm:$0xff]
    %v25 = vld [vmem:[%s1 + $0x18] sm:$0xff]
    %v26 = vld [vmem:[%s2] sm:$0xff]
    %v27 = vld [vmem:[%s2 + $0x8] sm:$0xff]
    %v28 = vld [vmem:[%s2 + $0x10] sm:$0xff]
    %v29 = vld [vmem:[%s2 + $0x18] sm:$0xff]
    %31 = vset.pattern.permute.xlu0 0
    %32 = vperm.xlu0 %31, %v22
    %v33 = vpop.permute.xlu0 %32
    %36 = vset.pattern.permute.xlu0 0
    %37 = vperm.xlu0 %36, %v23
    %v38 = vpop.permute.xlu0 %37
    %41 = vset.pattern.permute.xlu0 0
    %42 = vperm.xlu0 %41, %v24
    %v43 = vpop.permute.xlu0 %42
    %46 = vset.pattern.permute.xlu0 0
    %47 = vperm.xlu0 %46, %v25
    %v48 = vpop.permute.xlu0 %47
    %v50 = vlaneseq
    %v51 = vshrl.u32 %v50, 7
    %v52 = vsub.s32 0, %v51
    %v53 = vrot.slane %v19, %v52
    %v54 = vmul.f32 %v33, %v53
    %v55 = vmul.f32 %v38, %v53
    %v56 = vmul.f32 %v43, %v53
    %v57 = vmul.f32 %v48, %v53
    %59 = vset.pattern.permute.xlu0 0
    %60 = vperm.xlu0 %59, %v26
    %v61 = vpop.permute.xlu0 %60
    %64 = vset.pattern.permute.xlu0 0
    %65 = vperm.xlu0 %64, %v27
    %v66 = vpop.permute.xlu0 %65
    %69 = vset.pattern.permute.xlu0 0
    %70 = vperm.xlu0 %69, %v28
    %v71 = vpop.permute.xlu0 %70
    %74 = vset.pattern.permute.xlu0 0
    %75 = vperm.xlu0 %74, %v29
    %v76 = vpop.permute.xlu0 %75
    %v78 = vadd.f32 %v61, %v54
    %v79 = vadd.f32 %v66, %v55
    %v80 = vadd.f32 %v71, %v56
    %v81 = vadd.f32 %v76, %v57
    %82 = vset.pattern.permute.xlu0 1
    %83 = vperm.xlu0 %82, %v22
    %v84 = vpop.permute.xlu0 %83
    %86 = vset.pattern.permute.xlu0 1
    %87 = vperm.xlu0 %86, %v23
    %v88 = vpop.permute.xlu0 %87
    %90 = vset.pattern.permute.xlu0 1
    %91 = vperm.xlu0 %90, %v24
    %v92 = vpop.permute.xlu0 %91
    %94 = vset.pattern.permute.xlu0 1
    %95 = vperm.xlu0 %94, %v25
    %v96 = vpop.permute.xlu0 %95
    %v98 = vlaneseq
    %v99 = vshrl.u32 %v98, 7
    %v100 = vsub.s32 1, %v99
    %v101 = vrot.slane %v19, %v100
    %v102 = vmul.f32 %v84, %v101
    %v103 = vmul.f32 %v88, %v101
    %v104 = vmul.f32 %v92, %v101
    %v105 = vmul.f32 %v96, %v101
    %v106 = vadd.f32 %v78, %v102
    %v107 = vadd.f32 %v79, %v103
    %v108 = vadd.f32 %v80, %v104
    %v109 = vadd.f32 %v81, %v105
    %110 = vset.pattern.permute.xlu0 2
    %111 = vperm.xlu0 %110, %v22
    %v112 = vpop.permute.xlu0 %111
    %114 = vset.pattern.permute.xlu0 2
    %115 = vperm.xlu0 %114, %v23
    %v116 = vpop.permute.xlu0 %115
    %118 = vset.pattern.permute.xlu0 2
    %119 = vperm.xlu0 %118, %v24
    %v120 = vpop.permute.xlu0 %119
    %122 = vset.pattern.permute.xlu0 2
    %123 = vperm.xlu0 %122, %v25
    %v124 = vpop.permute.xlu0 %123
    %v126 = vlaneseq
    %v127 = vshrl.u32 %v126, 7
    %v128 = vsub.s32 2, %v127
    %v129 = vrot.slane %v19, %v128
    %v130 = vmul.f32 %v112, %v129
    %v131 = vmul.f32 %v116, %v129
    %v132 = vmul.f32 %v120, %v129
    %v133 = vmul.f32 %v124, %v129
    %v134 = vadd.f32 %v106, %v130
    %v135 = vadd.f32 %v107, %v131
    %v136 = vadd.f32 %v108, %v132
    %v137 = vadd.f32 %v109, %v133
    %138 = vset.pattern.permute.xlu0 3
    %139 = vperm.xlu0 %138, %v22
    %v140 = vpop.permute.xlu0 %139
    %142 = vset.pattern.permute.xlu0 3
    %143 = vperm.xlu0 %142, %v23
    %v144 = vpop.permute.xlu0 %143
    %146 = vset.pattern.permute.xlu0 3
    %147 = vperm.xlu0 %146, %v24
    %v148 = vpop.permute.xlu0 %147
    %150 = vset.pattern.permute.xlu0 3
    %151 = vperm.xlu0 %150, %v25
    %v152 = vpop.permute.xlu0 %151
    %v154 = vlaneseq
    %v155 = vshrl.u32 %v154, 7
    %v156 = vsub.s32 3, %v155
    %v157 = vrot.slane %v19, %v156
    %v158 = vmul.f32 %v140, %v157
    %v159 = vmul.f32 %v144, %v157
    %v160 = vmul.f32 %v148, %v157
    %v161 = vmul.f32 %v152, %v157
    %v162 = vadd.f32 %v134, %v158
    %v163 = vadd.f32 %v135, %v159
    %v164 = vadd.f32 %v136, %v160
    %v165 = vadd.f32 %v137, %v161
    %vm166 = vcmask 64512
    %167 = vst.msk [vmem:[%s3] sm:$0xff] %vm166, %v162
    %168 = vst.msk [vmem:[%s3 + $0x8] sm:$0xff] %vm166, %v163
    %169 = vst.msk [vmem:[%s3 + $0x10] sm:$0xff] %vm166, %v164
    %170 = vst.msk [vmem:[%s3 + $0x18] sm:$0xff] %vm166, %v165
    // Predicated region
    $region14: #{_time_warp_first_t.1} parent=1 // pred_check
      _
    $region15: #{_time_warp_first_t.1} parent=1 // pred_check_branch
      %172 = sbr.rel (0) target = $region17
    $region16: #{_time_warp_first_t.1} parent=1 // pred_region
      _
    $region17: #{_time_warp_first_t.1} parent=1 // pred_fallthru
      _
    // Predicated region
    $region18: #{_time_warp_first_t.1} parent=1 // pred_check
      _
    $region19: #{_time_warp_first_t.1} parent=1 // pred_check_branch
      %174 = sbr.rel (0) target = $region21
    $region20: #{_time_warp_first_t.1} parent=1 // pred_region
      %s176 = ssub.s32 64, 64
      %177 = vsyncadd [#allocation3], %s176
      %s179 = sshll.u32 [#allocation2], 4
      %s180 = int_to_ptr.vmem [resolvable:$true] %s179
      %182 = dma.vmem_to_hbm [thread:$0]  %s180, 64, %s4, [#allocation3]
    $region21: #{_time_warp_first_t.1} parent=1 // pred_fallthru
      _
    // Predicated region
    $region22: #{_time_warp_first_t.1} parent=1 // pred_check
      _
    $region23: #{_time_warp_first_t.1} parent=1 // pred_check_branch
      %184 = sbr.rel (0) target = $region25
    $region24: #{_time_warp_first_t.1} parent=1 // pred_region
      _
    $region25: #{_time_warp_first_t.1} parent=1 // pred_fallthru
      _
    // Predicated region
    $region26: #{_time_warp_first_t.1} parent=1 // pred_check
      _
    $region27: #{_time_warp_first_t.1} parent=1 // pred_check_branch
      %186 = sbr.rel (0) target = $region29
    $region28: #{_time_warp_first_t.1} parent=1 // pred_region
      %187 = dma.done [#allocation3], 64
    $region29: #{_time_warp_first_t.1} parent=1 // pred_fallthru
      _
    %188 = vsyncpa [#allocation3], 1

</llo_original>
